<compile_context>
chip_gen: v7x
topology: tpu7x:2x2x1
jax: 0.10.0
libtpu: 0.0.40
codegen_flags: <defaults>
</compile_context>

<pallas_src>
import jax
import jax.numpy as jnp
from jax.experimental import pallas as pl
from jax.experimental.pallas import tpu as pltpu


def _sigmoid_kernel(x_ref, o_ref):
    # sigmoid(x) = 1 / (1 + exp(-x)); exp runs on the EUP (free slot next to
    # the load/store traffic that actually bounds this kernel).
    o_ref[...] = jax.nn.sigmoid(x_ref[...])


def tudui_forward(x, *, target_block_bytes=2 * 1024 * 1024):
    """Apply elementwise sigmoid to a tensor via a Pallas TPU kernel."""
    orig_shape = x.shape
    dtype = x.dtype
    n = x.size
    itemsize = jnp.dtype(dtype).itemsize
    # Sublane packing: 8 rows/vreg for 32-bit, 16 for bf16, 32 for 8-bit.
    sub = max(8, 32 // itemsize)

    # Pick the widest lane dimension (multiple of 128) that divides the flat
    # size, so no padding / slicing (extra HBM passes) is needed.
    lanes = None
    for c in (1024, 512, 256, 128):
        if n % c == 0:
            lanes = c
            break

    if lanes is not None:
        x2d = jnp.reshape(x, (-1, lanes))          # contiguous reshape: free
        ragged = False
    else:
        # Rare fallback: flat size not a multiple of 128 -> pad to the
        # sublane-pack granularity for this dtype (16*128 for bf16, 8*128 f32).
        lanes = 128
        pad_to = sub * lanes
        padded = ((n + pad_to - 1) // pad_to) * pad_to
        x_flat = jnp.pad(jnp.reshape(x, (-1,)), (0, padded - n))
        x2d = jnp.reshape(x_flat, (padded // lanes, lanes))
        ragged = True

    rows = x2d.shape[0]

    # Rows per block sized to ~target_block_bytes, kept a multiple of the
    # sublane pack.  With double-buffered input + output this stays well
    # under every generation's default scoped VMEM budget (incl. v7x 64 MiB
    # physical / 32 MiB scoped).
    tr = max(sub, (target_block_bytes // (lanes * itemsize)) // sub * sub)
    tr = min(tr, rows)  # if rows < tr the block equals the full dim (allowed)

    grid = (pl.cdiv(rows, tr),)  # ragged last block -> masked stores, no pad

    out2d = pl.pallas_call(
        _sigmoid_kernel,
        out_shape=jax.ShapeDtypeStruct((rows, lanes), dtype),
        grid=grid,
        in_specs=[pl.BlockSpec((tr, lanes), lambda i: (i, 0))],
        out_specs=pl.BlockSpec((tr, lanes), lambda i: (i, 0)),
        compiler_params=pltpu.CompilerParams(
            dimension_semantics=("parallel",)  # shards rows across v7x's 2 TCs
        ),
    )(x2d)

    if ragged:
        out = jnp.reshape(jnp.reshape(out2d, (-1,))[:n], orig_shape)
    else:
        out = jnp.reshape(out2d, orig_shape)   # contiguous reshape: free
    return out


if __name__ == "__main__":
    key = jax.random.PRNGKey(0)
    # Small NCHW input consistent with the module's forward (elementwise).
    x = jax.random.normal(key, (2, 4, 16, 16), dtype=jnp.float32)

    out = tudui_forward(x)
    jax.block_until_ready(out)

    # Sanity check against the pure-JAX reference.
    ref = jax.nn.sigmoid(x)
    assert out.shape == x.shape and out.dtype == x.dtype
    assert jnp.allclose(out, ref, atol=1e-6, rtol=1e-6)

    print("KERNEL_OK")
</pallas_src>

<mosaic_0001>
module attributes {stable_mosaic.version = 11 : i64} {
  func.func @_sigmoid_kernel(%arg0: i32, %arg1: memref<2x1024xf32, #tpu.memory_space<vmem>>, %arg2: memref<2x1024xf32, #tpu.memory_space<vmem>>) attributes {dimension_semantics = [#tpu.dimension_semantics<parallel>], iteration_bounds = array<i64: 1>, scalar_prefetch = 0 : i64, scratch_operands = 0 : i64, tpu.core_type = #tpu.core_type<tc>, window_params = [{transform_indices = @transform_0, window_bounds = array<i64: 2, 1024>}, {transform_indices = @transform_1, window_bounds = array<i64: 2, 1024>}]} {
    %c0 = arith.constant 0 : index
    %c0_0 = arith.constant 0 : index
    %0 = vector.load %arg1[%c0, %c0_0] : memref<2x1024xf32, #tpu.memory_space<vmem>>, vector<2x1024xf32>
    %1 = arith.negf %0 : vector<2x1024xf32>
    %2 = math.exp %1 : vector<2x1024xf32>
    %cst = arith.constant 1.000000e+00 : f32
    %3 = vector.broadcast %cst : f32 to vector<2x1024xf32>
    %4 = arith.addf %3, %2 : vector<2x1024xf32>
    %5 = arith.divf %3, %4 : vector<2x1024xf32>
    %c0_1 = arith.constant 0 : index
    %c0_2 = arith.constant 0 : index
    %6 = vector.load %arg2[%c0_1, %c0_2] : memref<2x1024xf32, #tpu.memory_space<vmem>>, vector<2x1024xf32>
    tpu.vector_store %arg2[%c0_1, %c0_2], %5 {strides = array<i32>} : memref<2x1024xf32, #tpu.memory_space<vmem>>, vector<2x1024xf32>,
    return
  }
  func.func @transform_0(%arg0: i32) -> (i32, i32) {
    %c0_i32 = arith.constant 0 : i32
    %c0_i32_0 = arith.constant 0 : i32
    return %arg0, %c0_i32 : i32, i32
  }
  func.func @transform_1(%arg0: i32) -> (i32, i32) {
    %c0_i32 = arith.constant 0 : i32
    %c0_i32_0 = arith.constant 0 : i32
    return %arg0, %c0_i32 : i32, i32
  }
}

</mosaic_0001>

<llo_original>
// kernel: tpu_custom_call.1
$region0: #{tpu_custom_call.1}
  #allocation0 [shape = 'u32[]', space=smem, size = 0x4, offset = 0x4, fixed_abs, tag = 'smem constant byte address 0x4 - core index']
  #allocation1 [shape = 'u32[144,128]{1,0:T(1,128)}', space=vmem, size = 0x12000, scoped, tag = 'internal scratch']
  %s0 = inlined_call_operand.hbm [shape: f32[2,1024], index: 0, kind: input, shape index: {}]
  %s1 = inlined_call_operand.hbm [shape: f32[2,1024], index: 1, kind: output, shape index: {}]
  %s2 = sld [smem:[#allocation0]]
  $region18: #{tpu_custom_call.1} parent=0
    _
  %s4 = ssub.s32 1, %s2
  %s5 = scalar_select 0, %s4, %s2
  $region1: #{tpu_custom_call.1} parent=0
    #allocation2 [shape = 'u8[8192]{0}', space=vmem, size = 0x2000, scoped, tag = 'input window, operand 0, single buffered']
    #allocation3 [shape = 's32[1]{0}', space=sflag, size = 0x4, scoped, tag = 'scoped memory for tpu_custom_call.1']
    #allocation4 [shape = 's32[1]{0}', space=sflag, size = 0x4, scoped, tag = 'scoped memory for tpu_custom_call.1']
    #allocation5 [shape = 'u8[8192]{0}', space=vmem, size = 0x2000, scoped, tag = 'output window, operand 0, single buffered']
    %6 = vsyncpa [#allocation3], 0
    %7 = vsyncpa [#allocation4], 0
    // Predicated region
    $region2: #{tpu_custom_call.1} parent=1 // pred_check
      _
    $region3: #{tpu_custom_call.1} parent=1 // pred_check_branch
      %9 = sbr.rel (0) target = $region5
    $region4: #{tpu_custom_call.1} parent=1 // pred_region
      %s11 = ssub.s32 256, 256
      %12 = vsyncadd [#allocation3], %s11
      %s14 = sshll.u32 [#allocation2], 4
      %s15 = int_to_ptr.vmem [resolvable:$true] %s14
      %17 = dma.hbm_to_vmem [thread:$0]  %s0, 256, %s15, [#allocation3]
    $region5: #{tpu_custom_call.1} parent=1 // pred_fallthru
      _
    // Predicated region
    $region6: #{tpu_custom_call.1} parent=1 // pred_check
      _
    $region7: #{tpu_custom_call.1} parent=1 // pred_check_branch
      %19 = sbr.rel (0) target = $region9
    $region8: #{tpu_custom_call.1} parent=1 // pred_region
      %20 = dma.done [#allocation3], 256
    $region9: #{tpu_custom_call.1} parent=1 // pred_fallthru
      _
    %v21 = vld [vmem:[#allocation2] sm:$0xff]
    %v22 = vld [vmem:[#allocation2 + $0x8] sm:$0xff]
    %v23 = vxor.u32 %v21, 2147483648
    %v24 = vxor.u32 %v22, 2147483648
    %v25 = vmul.f32 %v23, 1.442695
    %v26 = vpow.pop %v25
    %v27 = vmul.f32 %v24, 1.442695
    %v28 = vpow.pop %v27
    %v29 = vadd.f32 %v26, 1.0
    %v30 = vadd.f32 %v28, 1.0
    %v31 = vrcp.pop %v29
    %v32 = vmul.f32 1.0, %v31
    %v33 = vrcp.pop %v30
    %v34 = vmul.f32 1.0, %v33
    %35 = vst [vmem:[#allocation5] sm:$0xff] %v32
    %36 = vst [vmem:[#allocation5 + $0x8] sm:$0xff] %v34
    // Predicated region
    $region10: #{tpu_custom_call.1} parent=1 // pred_check
      _
    $region11: #{tpu_custom_call.1} parent=1 // pred_check_branch
      %38 = sbr.rel (0) target = $region13
    $region12: #{tpu_custom_call.1} parent=1 // pred_region
      %s40 = ssub.s32 256, 256
      %41 = vsyncadd [#allocation4], %s40
      %s43 = sshll.u32 [#allocation5], 4
      %s44 = int_to_ptr.vmem [resolvable:$true] %s43
      %46 = dma.vmem_to_hbm [thread:$0]  %s44, 256, %s1, [#allocation4]
    $region13: #{tpu_custom_call.1} parent=1 // pred_fallthru
      _
    // Predicated region
    $region14: #{tpu_custom_call.1} parent=1 // pred_check
      _
    $region15: #{tpu_custom_call.1} parent=1 // pred_check_branch
      %48 = sbr.rel (0) target = $region17
    $region16: #{tpu_custom_call.1} parent=1 // pred_region
      %49 = dma.done [#allocation4], 256
    $region17: #{tpu_custom_call.1} parent=1 // pred_fallthru
      _
    %50 = vsyncpa [#allocation3], 1
    %51 = vsyncpa [#allocation4], 1

</llo_original>
